<compile_context>
chip_gen: v7x
topology: tpu7x:2x2x1
jax: 0.10.0
libtpu: 0.0.40
codegen_flags: <defaults>
</compile_context>

<pallas_src>
import functools
import math

import jax
import jax.numpy as jnp
from jax import lax
from jax.experimental import pallas as pl
from jax.experimental.pallas import tpu as pltpu


# ----------------------------------------------------------------------------
# Pallas kernel: fused log-softmax + target NLL + label-smoothing + mean
# ----------------------------------------------------------------------------
def _label_smoothing_kernel(x_ref, t_ref, o_ref, acc_ref, *,
                            m_total, num_row_blocks, blocks_per_part,
                            confidence, smoothing):
    p = pl.program_id(0)          # partition (TensorCore on v7x)
    i = pl.program_id(1)          # row-block index within this partition
    tm, c = x_ref.shape

    @pl.when(i == 0)
    def _init():
        acc_ref[...] = jnp.zeros_like(acc_ref)

    blk = p * blocks_per_part + i               # logical (unclamped) row block

    x = x_ref[...].astype(jnp.float32)          # (TM, C) cast in-register

    # log-sum-exp pieces of log-softmax (f32 for numerics)
    row_max = jnp.max(x, axis=-1, keepdims=True)                      # (TM, 1)
    lse = jnp.log(jnp.sum(jnp.exp(x - row_max), axis=-1, keepdims=True))

    # Folded gather + smoothing term:
    #   confidence * x[target] + smoothing * mean(x)
    #     = sum_c x_c * (smoothing/C + confidence * onehot_c)
    col = lax.broadcasted_iota(jnp.int32, (tm, c), 1)
    w = jnp.where(col == t_ref[...], confidence + smoothing / c, smoothing / c)
    picked = jnp.sum(w * x, axis=-1, keepdims=True)                   # (TM, 1)

    loss_rows = lse + row_max - picked                                # (TM, 1)

    # Mask (a) rows past M inside a partial final block, (b) whole blocks
    # whose logical index was clamped in the index_map (blk >= num_row_blocks).
    row_idx = blk * tm + lax.broadcasted_iota(jnp.int32, (tm, 1), 0)
    valid = jnp.logical_and(blk < num_row_blocks, row_idx < m_total)
    acc_ref[...] += jnp.where(valid, loss_rows, 0.0)

    @pl.when(i == pl.num_programs(1) - 1)
    def _finalize():
        part_mean = jnp.sum(acc_ref[...]) * (1.0 / m_total)
        o_ref[...] = jnp.full(o_ref.shape, part_mean, dtype=o_ref.dtype)


# ----------------------------------------------------------------------------
# Wrapper
# ----------------------------------------------------------------------------
def _choose_row_tile(m, c, itemsize, block_rows):
    # sublane packing multiple for the native dtype
    if itemsize >= 4:
        mult = 8
    elif itemsize == 2:
        mult = 16
    else:
        mult = 32

    try:
        vmem_cap = int(pltpu.get_tpu_info().vmem_capacity_bytes)
    except Exception:
        vmem_cap = 64 * 1024 * 1024           # conservative (v7x per-TC)

    c_pad = ((c + 127) // 128) * 128          # VMEM lane padding
    # Per-row VMEM working set: 2 double-buffered native-dtype x tiles plus
    # ~3 live f32 (TM, C) temporaries, plus slop for target/scratch/output.
    per_row = c_pad * (2 * itemsize + 3 * 4) + 64
    vmem_budget = min(vmem_cap // 2, 48 * 1024 * 1024)
    tm_cap = max(mult, (vmem_budget // per_row) // mult * mult)
    # ~4 MiB x tile: large enough to amortize the ~0.35us per-step overhead.
    tm_target = max(mult, ((4 * 1024 * 1024) // (c_pad * itemsize)) // mult * mult)
    tm = min(tm_cap, tm_target)
    if block_rows is not None:
        tm = min(tm, max(mult, (block_rows // mult) * mult))
    tm = min(tm, ((m + mult - 1) // mult) * mult)   # never exceed rounded M
    vmem_limit = int(min(vmem_cap, vmem_budget + (4 << 20)))
    return tm, vmem_limit


def label_smoothing_loss(x, target, smoothing=0.0, block_rows=None):
    """Equivalent of LabelSmoothing(smoothing).forward(x, target).

    x:      (..., C) float logits (f32 or bf16, streamed in native dtype)
    target: (...)    integer class indices
    returns scalar mean loss (f32).
    """
    *lead, c = x.shape
    m = math.prod(lead)
    confidence = 1.0 - smoothing
    itemsize = x.dtype.itemsize

    x2 = x.reshape(m, c)                        # native dtype, no extra HBM pass
    t2 = target.reshape(m, 1).astype(jnp.int32)

    tm, vmem_limit = _choose_row_tile(m, c, itemsize, block_rows)
    nb = pl.cdiv(m, tm)                         # row blocks (last may be partial)
    num_parts = 2                               # 2 TCs on v7x; harmless on 1-TC chips
    bpp = pl.cdiv(nb, num_parts)

    def row_map(pidx, i):
        # clamp so an over-shooting partition never requests an OOB block;
        # the kernel masks the clamped block entirely
        return (jnp.minimum(pidx * bpp + i, nb - 1), 0)

    kernel = functools.partial(
        _label_smoothing_kernel,
        m_total=m, num_row_blocks=nb, blocks_per_part=bpp,
        confidence=float(confidence), smoothing=float(smoothing))

    out = pl.pallas_call(
        kernel,
        out_shape=jax.ShapeDtypeStruct((num_parts, 8, 128), jnp.float32),
        grid=(num_parts, bpp),
        in_specs=[
            pl.BlockSpec((tm, c), row_map),     # logits tile (native dtype)
            pl.BlockSpec((tm, 1), row_map),     # target column
        ],
        out_specs=pl.BlockSpec((1, 8, 128), lambda pidx, i: (pidx, 0, 0)),
        scratch_shapes=[pltpu.VMEM((tm, 1), jnp.float32)],
        compiler_params=pltpu.CompilerParams(
            dimension_semantics=("parallel", "arbitrary"),
            vmem_limit_bytes=vmem_limit),
        cost_estimate=pl.CostEstimate(
            flops=6 * m * c,
            transcendentals=m * c + m,
            bytes_accessed=m * c * itemsize + m * 4 + num_parts * 8 * 128 * 4),
    )(x2, t2)

    # one partial mean per partition -> scalar
    return jnp.sum(out[:, 0, 0])


if __name__ == "__main__":
    B, S, C = 2, 9, 32      # M = 18 rows -> exercises a partial last tile
    smoothing = 0.1

    key = jax.random.PRNGKey(0)
    kx, kt = jax.random.split(key)
    x = jax.random.normal(kx, (B, S, C), jnp.float32)
    target = jax.random.randint(kt, (B, S), 0, C, dtype=jnp.int32)

    # small block_rows so the demo exercises multiple grid steps, both
    # partitions, the accumulator, and the partial-tile row mask
    loss_fn = jax.jit(functools.partial(label_smoothing_loss,
                                        smoothing=smoothing, block_rows=8))
    loss = loss_fn(x, target)
    jax.block_until_ready(loss)

    # pure-JAX reference (same semantics as the PyTorch module)
    logprobs = jax.nn.log_softmax(x, axis=-1)
    nll = -jnp.take_along_axis(logprobs, target[..., None], axis=-1)[..., 0]
    smooth = -jnp.mean(logprobs, axis=-1)
    ref = jnp.mean((1.0 - smoothing) * nll + smoothing * smooth)

    assert loss.shape == ()
    assert bool(jnp.isfinite(loss))
    assert jnp.allclose(loss, ref, rtol=1e-5, atol=1e-6), (float(loss), float(ref))

    # native bf16 streaming path (no wrapper upcast): halves kernel HBM bytes
    x_bf16 = x.astype(jnp.bfloat16)
    loss_bf16 = jax.jit(functools.partial(label_smoothing_loss,
                                          smoothing=smoothing,
                                          block_rows=16))(x_bf16, target)
    jax.block_until_ready(loss_bf16)
    assert bool(jnp.isfinite(loss_bf16))
    assert jnp.allclose(loss_bf16, ref, rtol=5e-2, atol=5e-2), (
        float(loss_bf16), float(ref))

    print("KERNEL_OK")
</pallas_src>

<mosaic_0001>
module attributes {stable_mosaic.version = 11 : i64} {
  func.func @_label_smoothing_kernel(%arg0: i32, %arg1: i32, %arg2: memref<8x32xf32, #tpu.memory_space<vmem>>, %arg3: memref<8x1xi32, #tpu.memory_space<vmem>>, %arg4: memref<1x8x128xf32, #tpu.memory_space<vmem>>, %arg5: memref<8x1xf32, #tpu.memory_space<vmem>>) attributes {dimension_semantics = [#tpu.dimension_semantics<parallel>, #tpu.dimension_semantics<arbitrary>], iteration_bounds = array<i64: 2, 2>, scalar_prefetch = 0 : i64, scratch_operands = 1 : i64, tpu.core_type = #tpu.core_type<tc>, window_params = [{transform_indices = @transform_0, window_bounds = array<i64: 8, 32>}, {transform_indices = @transform_1, window_bounds = array<i64: 8, 1>}, {transform_indices = @transform_2, window_bounds = array<i64: 1, 8, 128>}]} {
    %c0_i32 = arith.constant 0 : i32
    %0 = arith.cmpi eq, %arg1, %c0_i32 : i32
    %1 = arith.extui %0 : i1 to i32
    %c0_i32_0 = arith.constant 0 : i32
    %2 = arith.cmpi ne, %1, %c0_i32_0 : i32
    scf.if %2 {
      %cst_14 = arith.constant 0.000000e+00 : f32
      %43 = vector.broadcast %cst_14 : f32 to vector<8x1xf32>
      %c0_15 = arith.constant 0 : index
      %c0_16 = arith.constant 0 : index
      %44 = vector.load %arg5[%c0_15, %c0_16] : memref<8x1xf32, #tpu.memory_space<vmem>>, vector<8x1xf32>
      tpu.vector_store %arg5[%c0_15, %c0_16], %43 {strides = array<i32>} : memref<8x1xf32, #tpu.memory_space<vmem>>, vector<8x1xf32>,
    } else {
    }
    %c2_i32 = arith.constant 2 : i32
    %3 = arith.muli %arg0, %c2_i32 : i32
    %4 = arith.addi %3, %arg1 : i32
    %c0 = arith.constant 0 : index
    %c0_1 = arith.constant 0 : index
    %5 = vector.load %arg2[%c0, %c0_1] : memref<8x32xf32, #tpu.memory_space<vmem>>, vector<8x32xf32>
    %cst = arith.constant dense<0xFF800000> : vector<8xf32>
    %6 = vector.multi_reduction <maximumf>, %5, %cst [1] : vector<8x32xf32> to vector<8xf32>
    %7 = vector.shape_cast %6 : vector<8xf32> to vector<8x1xf32>
    %8 = vector.broadcast %7 : vector<8x1xf32> to vector<8x32xf32>
    %9 = arith.subf %5, %8 : vector<8x32xf32>
    %10 = math.exp %9 : vector<8x32xf32>
    %cst_2 = arith.constant dense<0.000000e+00> : vector<8xf32>
    %11 = vector.multi_reduction <add>, %10, %cst_2 [1] : vector<8x32xf32> to vector<8xf32>
    %12 = vector.shape_cast %11 : vector<8xf32> to vector<8x1xf32>
    %13 = math.log %12 : vector<8x1xf32>
    %14 = tpu.iota {dimensions = array<i32: 1>} : vector<8x32xi32>
    %c0_3 = arith.constant 0 : index
    %c0_4 = arith.constant 0 : index
    %15 = vector.load %arg3[%c0_3, %c0_4] : memref<8x1xi32, #tpu.memory_space<vmem>>, vector<8x1xi32>
    %16 = vector.broadcast %15 : vector<8x1xi32> to vector<8x32xi32>
    %17 = arith.cmpi eq, %14, %16 : vector<8x32xi32>
    %cst_5 = arith.constant 0.903124988 : f32
    %cst_6 = arith.constant 3.125000e-03 : f32
    %18 = vector.broadcast %cst_5 : f32 to vector<8x32xf32>
    %19 = vector.broadcast %cst_6 : f32 to vector<8x32xf32>
    %20 = arith.select %17, %18, %19 : vector<8x32xi1>, vector<8x32xf32>
    %21 = arith.mulf %20, %5 : vector<8x32xf32>
    %cst_7 = arith.constant dense<0.000000e+00> : vector<8xf32>
    %22 = vector.multi_reduction <add>, %21, %cst_7 [1] : vector<8x32xf32> to vector<8xf32>
    %23 = vector.shape_cast %22 : vector<8xf32> to vector<8x1xf32>
    %24 = arith.addf %13, %7 : vector<8x1xf32>
    %25 = arith.subf %24, %23 : vector<8x1xf32>
    %c8_i32 = arith.constant 8 : i32
    %26 = arith.muli %4, %c8_i32 : i32
    %27 = tpu.iota {dimensions = array<i32: 0>} : vector<8x1xi32>
    %28 = vector.broadcast %26 : i32 to vector<8x1xi32>
    %29 = arith.addi %28, %27 : vector<8x1xi32>
    %c3_i32 = arith.constant 3 : i32
    %30 = arith.cmpi slt, %4, %c3_i32 : i32
    %c18_i32 = arith.constant 18 : i32
    %31 = vector.broadcast %c18_i32 : i32 to vector<8x1xi32>
    %32 = arith.cmpi slt, %29, %31 : vector<8x1xi32>
    %33 = vector.broadcast %30 : i1 to vector<8x1xi1>
    %34 = arith.andi %33, %32 : vector<8x1xi1>
    %c0_8 = arith.constant 0 : index
    %c0_9 = arith.constant 0 : index
    %35 = vector.load %arg5[%c0_8, %c0_9] : memref<8x1xf32, #tpu.memory_space<vmem>>, vector<8x1xf32>
    %cst_10 = arith.constant 0.000000e+00 : f32
    %36 = vector.broadcast %cst_10 : f32 to vector<8x1xf32>
    %37 = arith.select %34, %25, %36 : vector<8x1xi1>, vector<8x1xf32>
    %38 = arith.addf %35, %37 : vector<8x1xf32>
    %c0_11 = arith.constant 0 : index
    %c0_12 = arith.constant 0 : index
    %39 = vector.load %arg5[%c0_11, %c0_12] : memref<8x1xf32, #tpu.memory_space<vmem>>, vector<8x1xf32>
    tpu.vector_store %arg5[%c0_11, %c0_12], %38 {strides = array<i32>} : memref<8x1xf32, #tpu.memory_space<vmem>>, vector<8x1xf32>,
    %c1_i32 = arith.constant 1 : i32
    %40 = arith.cmpi eq, %arg1, %c1_i32 : i32
    %41 = arith.extui %40 : i1 to i32
    %c0_i32_13 = arith.constant 0 : i32
    %42 = arith.cmpi ne, %41, %c0_i32_13 : i32
    scf.if %42 {
      %c0_14 = arith.constant 0 : index
      %c0_15 = arith.constant 0 : index
      %43 = vector.load %arg5[%c0_14, %c0_15] : memref<8x1xf32, #tpu.memory_space<vmem>>, vector<8x1xf32>
      %44 = vector.shape_cast %43 : vector<8x1xf32> to vector<1x8x1xf32>
      %cst_16 = arith.constant dense<0.000000e+00> : vector<1xf32>
      %45 = vector.multi_reduction <add>, %44, %cst_16 [1, 2] : vector<1x8x1xf32> to vector<1xf32>
      %46 = vector.shape_cast %45 : vector<1xf32> to vector<1x1x1xf32>
      %47 = vector.extract %46[0, 0, 0] : f32 from vector<1x1x1xf32>
      %cst_17 = arith.constant 0.055555556 : f32
      %48 = arith.mulf %47, %cst_17 : f32
      %49 = vector.broadcast %48 : f32 to vector<1x8x128xf32>
      %c0_18 = arith.constant 0 : index
      %c0_19 = arith.constant 0 : index
      %c0_20 = arith.constant 0 : index
      %50 = vector.load %arg4[%c0_18, %c0_19, %c0_20] : memref<1x8x128xf32, #tpu.memory_space<vmem>>, vector<1x8x128xf32>
      tpu.vector_store %arg4[%c0_18, %c0_19, %c0_20], %49 {strides = array<i32>} : memref<1x8x128xf32, #tpu.memory_space<vmem>>, vector<1x8x128xf32>,
    } else {
    }
    return
  }
  func.func @transform_0(%arg0: i32, %arg1: i32) -> (i32, i32) {
    %c2_i32 = arith.constant 2 : i32
    %0 = arith.muli %arg0, %c2_i32 : i32
    %1 = arith.addi %0, %arg1 : i32
    %c2_i32_0 = arith.constant 2 : i32
    %2 = arith.minsi %1, %c2_i32_0 : i32
    %c0_i32 = arith.constant 0 : i32
    %c0_i32_1 = arith.constant 0 : i32
    return %2, %c0_i32 : i32, i32
  }
  func.func @transform_1(%arg0: i32, %arg1: i32) -> (i32, i32) {
    %c2_i32 = arith.constant 2 : i32
    %0 = arith.muli %arg0, %c2_i32 : i32
    %1 = arith.addi %0, %arg1 : i32
    %c2_i32_0 = arith.constant 2 : i32
    %2 = arith.minsi %1, %c2_i32_0 : i32
    %c0_i32 = arith.constant 0 : i32
    %c0_i32_1 = arith.constant 0 : i32
    return %2, %c0_i32 : i32, i32
  }
  func.func @transform_2(%arg0: i32, %arg1: i32) -> (i32, i32, i32) {
    %c0_i32 = arith.constant 0 : i32
    %c0_i32_0 = arith.constant 0 : i32
    %c0_i32_1 = arith.constant 0 : i32
    return %arg0, %c0_i32, %c0_i32_0 : i32, i32, i32
  }
}

</mosaic_0001>

<llo_original>
// kernel: label_smoothing_loss.1
$region0: #{label_smoothing_loss.1}
  #allocation0 [shape = 'u32[]', space=smem, size = 0x4, offset = 0x4, fixed_abs, tag = 'smem constant byte address 0x4 - core index']
  #allocation1 [shape = 'u32[144,128]{1,0:T(1,128)}', space=vmem, size = 0x12000, scoped, tag = 'internal scratch']
  #allocation2 [shape = 'f32[8,1]{1,0:T(8,128)}', space=vmem, size = 0x1000, scoped, tag = 'scratch operand']
  %s0 = inlined_call_operand.vmem [shape: f32[18,32], index: 0, kind: input, shape index: {}]
  %s1 = inlined_call_operand.vmem [shape: s32[18,1], index: 1, kind: input, shape index: {}]
  %s2 = inlined_call_operand.vmem [shape: f32[2,8,128], index: 2, kind: output, shape index: {}]
  %s3 = sld [smem:[#allocation0]]
  $region49: #{label_smoothing_loss.1} parent=0
    _
  %s5 = ssub.s32 1, %s3
  %s6 = scalar_select 0, %s5, %s3
  loop: start=0, step=1, limit=6
  $region2: #{label_smoothing_loss.1} parent=0 // loop_pre_header
    _
  $region3: #{label_smoothing_loss.1} parent=0 // loop_header
    %s8 = sphi 0, %s12
    %p9 = scmp.ge.s32.totalorder %s8, 6
    %s15 = sphi 0, %s27
    %s16 = sphi 0, %s23
    %s17 = sphi 0, %s15
    %s18 = sphi 0, %s16
    %s19 = sphi 0, %s17
    %s20 = sphi 0, %s18
    %s38 = sphi 0, %s40
    %s41 = sphi 0, %s38
    %s42 = sphi 0, %s41
    %s58 = sphi 0, %s42
    %s72 = sphi 0, %s74
    %s75 = sphi 0, %s72
    %s76 = sphi 0, %s75
    %s92 = sphi 0, %s76
    %s98 = sphi 0, %s100
    %s101 = sphi 0, %s98
    %s102 = sphi 0, %s101
    %s118 = sphi 0, %s102
  $region4: #{label_smoothing_loss.1} parent=0 // loop_header_branch
    %11 = sbr.rel (%p9) target = $region8
  $region5: #{label_smoothing_loss.1} parent=0 // loop_body
    %s13 = ssub.s32 %s8, 1
    %s14 = ssub.s32 %s8, 2
    %s21 = sadd.s32 1, %s16
    %p22 = scmp.ge.s32.totalorder %s21, 2
    %s23 = scalar_select %p22, 0, %s21
    %s24 = sadd.s32 1, %s15
    %s25 = scalar_select %p22, %s24, %s15
    %p26 = scmp.ge.s32.totalorder %s25, 2
    %s27 = scalar_select %p26, 0, %s25
    %s28 = smul.u32 %s15, 2
    %s29 = sadd.s32 %s28, %s16
    %p30 = scmp.lt.s32.totalorder %s29, 2
    %s31 = scalar_select %p30, %s29, 2
    %s32 = smul.u32 %s27, 2
    %s33 = sadd.s32 %s32, %s23
    %p34 = scmp.lt.s32.totalorder %s33, 2
    %s35 = scalar_select %p34, %s33, 2
    %s36 = ssub.s32 %s31, %s35
    %p37 = scmp.eq.s32.totalorder %s36, 0
    %s39 = sadd.s32 %s38, 1
    %s40 = scalar_select %p37, %s38, %s39
    %p43 = pneg %p37
    %p44 = scmp.eq.s32.totalorder %s8, 3
    %p45 = por %p43, %p44
    %p46 = scmp.ne.s32.totalorder %s38, %s41
    %p47 = scmp.eq.s32.totalorder %s8, 0
    %p48 = por %p46, %p47
    %p49 = scmp.ne.s32.totalorder %s38, %s41
    %p50 = scmp.eq.s32.totalorder %s13, 3
    %p51 = por %p49, %p50
    %p52 = scmp.ne.s32.totalorder %s41, %s42
    %p53 = scmp.eq.s32.totalorder %s13, 0
    %p54 = por %p52, %p53
    %p55 = scmp.ne.s32.totalorder %s41, %s42
    %p56 = scmp.eq.s32.totalorder %s14, 3
    %p57 = por %p55, %p56
    %p59 = scmp.ne.s32.totalorder %s42, %s58
    %p60 = scmp.eq.s32.totalorder %s14, 0
    %p61 = por %p59, %p60
    %s62 = smul.u32 %s15, 2
    %s63 = sadd.s32 %s62, %s16
    %p64 = scmp.lt.s32.totalorder %s63, 2
    %s65 = scalar_select %p64, %s63, 2
    %s66 = smul.u32 %s27, 2
    %s67 = sadd.s32 %s66, %s23
    %p68 = scmp.lt.s32.totalorder %s67, 2
    %s69 = scalar_select %p68, %s67, 2
    %s70 = ssub.s32 %s65, %s69
    %p71 = scmp.eq.s32.totalorder %s70, 0
    %s73 = sadd.s32 %s72, 1
    %s74 = scalar_select %p71, %s72, %s73
    %p77 = pneg %p71
    %p78 = scmp.eq.s32.totalorder %s8, 3
    %p79 = por %p77, %p78
    %p80 = scmp.ne.s32.totalorder %s72, %s75
    %p81 = scmp.eq.s32.totalorder %s8, 0
    %p82 = por %p80, %p81
    %p83 = scmp.ne.s32.totalorder %s72, %s75
    %p84 = scmp.eq.s32.totalorder %s13, 3
    %p85 = por %p83, %p84
    %p86 = scmp.ne.s32.totalorder %s75, %s76
    %p87 = scmp.eq.s32.totalorder %s13, 0
    %p88 = por %p86, %p87
    %p89 = scmp.ne.s32.totalorder %s75, %s76
    %p90 = scmp.eq.s32.totalorder %s14, 3
    %p91 = por %p89, %p90
    %p93 = scmp.ne.s32.totalorder %s76, %s92
    %p94 = scmp.eq.s32.totalorder %s14, 0
    %p95 = por %p93, %p94
    %s96 = ssub.s32 %s15, %s27
    %p97 = scmp.eq.s32.totalorder %s96, 0
    %s99 = sadd.s32 %s98, 1
    %s100 = scalar_select %p97, %s98, %s99
    %p103 = pneg %p97
    %p104 = scmp.eq.s32.totalorder %s8, 3
    %p105 = por %p103, %p104
    %p106 = scmp.ne.s32.totalorder %s98, %s101
    %p107 = scmp.eq.s32.totalorder %s8, 0
    %p108 = por %p106, %p107
    %p109 = scmp.ne.s32.totalorder %s98, %s101
    %p110 = scmp.eq.s32.totalorder %s13, 3
    %p111 = por %p109, %p110
    %p112 = scmp.ne.s32.totalorder %s101, %s102
    %p113 = scmp.eq.s32.totalorder %s13, 0
    %p114 = por %p112, %p113
    %p115 = scmp.ne.s32.totalorder %s101, %s102
    %p116 = scmp.eq.s32.totalorder %s14, 3
    %p117 = por %p115, %p116
    %p119 = scmp.ne.s32.totalorder %s102, %s118
    %p120 = scmp.eq.s32.totalorder %s14, 0
    %p121 = por %p119, %p120
    %p122 = scmp.le.s32.totalorder 1, %s8
    %p123 = scmp.lt.s32.totalorder %s8, 5
    %p124 = pnand %p122, %p123
    %p125 = pneg %p124
    // Predicated region
    $region9: #{label_smoothing_loss.1} parent=5 // pred_check
      _
    $region10: #{label_smoothing_loss.1} parent=5 // pred_check_branch
      %127 = sbr.rel (%p124) target = $region12
    $region11: #{label_smoothing_loss.1} parent=5 // pred_region
      %s128 = ssub.s32 %s8, 1
    $region12: #{label_smoothing_loss.1} parent=5 // pred_fallthru
      _
    %p129 = scmp.lt.s32.totalorder %s8, 4
    // Predicated region
    $region13: #{label_smoothing_loss.1} parent=5 // pred_check
      %p130 = pneg %p129
    $region14: #{label_smoothing_loss.1} parent=5 // pred_check_branch
      %132 = sbr.rel (%p130) target = $region16
    $region15: #{label_smoothing_loss.1} parent=5 // pred_region
      // Predicated region
      $region17: #{label_smoothing_loss.1} parent=15 // pred_check
        %p133 = pneg %p48
      $region18: #{label_smoothing_loss.1} parent=15 // pred_check_branch
        %135 = sbr.rel (%p133) target = $region20
      $region19: #{label_smoothing_loss.1} parent=15 // pred_region
        %s136 = smul.u32 %s15, 2
        %s137 = sadd.s32 %s136, %s16
        %p138 = scmp.lt.s32.totalorder %s137, 2
        %s139 = scalar_select %p138, %s137, 2
        %p140 = scmp.lt.s32.totalorder %s139, 2
        %s141 = scalar_select %p140, %s139, 2
        %s142 = smul.addr %s141, 8
        %s143 = scalar_lea.vmem %s0, %s142
        %s144 = smul.u32 %s15, 2
        %s145 = sadd.s32 %s144, %s16
        %p146 = scmp.lt.s32.totalorder %s145, 2
        %s147 = scalar_select %p146, %s145, 2
      $region20: #{label_smoothing_loss.1} parent=15 // pred_fallthru
        _
      // Predicated region
      $region21: #{label_smoothing_loss.1} parent=15 // pred_check
        %p148 = pneg %p82
      $region22: #{label_smoothing_loss.1} parent=15 // pred_check_branch
        %150 = sbr.rel (%p148) target = $region24
      $region23: #{label_smoothing_loss.1} parent=15 // pred_region
        %s151 = smul.u32 %s15, 2
        %s152 = sadd.s32 %s151, %s16
        %p153 = scmp.lt.s32.totalorder %s152, 2
        %s154 = scalar_select %p153, %s152, 2
        %p155 = scmp.lt.s32.totalorder %s154, 2
        %s156 = scalar_select %p155, %s154, 2
        %s157 = smul.addr %s156, 8
        %s158 = scalar_lea.vmem %s1, %s157
        %s159 = smul.u32 %s15, 2
        %s160 = sadd.s32 %s159, %s16
        %p161 = scmp.lt.s32.totalorder %s160, 2
        %s162 = scalar_select %p161, %s160, 2
      $region24: #{label_smoothing_loss.1} parent=15 // pred_fallthru
        _
    $region16: #{label_smoothing_loss.1} parent=5 // pred_fallthru
      _
    %p163 = scmp.le.s32.totalorder 1, %s8
    %p164 = scmp.lt.s32.totalorder %s8, 5
    %p165 = pnand %p163, %p164
    %p166 = pneg %p165
    // Predicated region
    $region25: #{label_smoothing_loss.1} parent=5 // pred_check
      _
    $region26: #{label_smoothing_loss.1} parent=5 // pred_check_branch
      %168 = sbr.rel (%p165) target = $region28
    $region27: #{label_smoothing_loss.1} parent=5 // pred_region
      %s169 = ssub.s32 %s8, 1
      %s170 = smul.u32 %s17, 2
      %s171 = sadd.s32 %s170, %s18
      %p172 = scmp.lt.s32.totalorder %s171, 2
      %s173 = scalar_select %p172, %s171, 2
      %p174 = scmp.lt.s32.totalorder %s173, 2
      %s175 = scalar_select %p174, %s173, 2
      %s176 = smul.addr %s175, 8
      %s177 = scalar_lea.vmem %s0, %s176
      %p178 = pneg %p54
      %p179 = pneg %p51
      %s180 = smul.u32 %s17, 2
      %s181 = sadd.s32 %s180, %s18
      %p182 = scmp.lt.s32.totalorder %s181, 2
      %s183 = scalar_select %p182, %s181, 2
      %p184 = scmp.lt.s32.totalorder %s183, 2
      %s185 = scalar_select %p184, %s183, 2
      %s186 = smul.addr %s185, 8
      %s187 = scalar_lea.vmem %s1, %s186
      %p188 = pneg %p88
      %p189 = pneg %p85
      %p190 = pneg %p114
      %p191 = pneg %p111
      %p192 = scmp.lt.s32.totalorder %s17, 1
      %s193 = scalar_select %p192, %s17, 1
      %s194 = smul.addr %s193, 8
      %s195 = scalar_lea.vmem %s2, %s194
      %s196 = smul.u32 %s17, 2
      %s197 = sadd.s32 %s196, %s18
      %p198 = scmp.lt.s32.totalorder %s197, 2
      %s199 = scalar_select %p198, %s197, 2
      %p200 = scmp.lt.s32.totalorder %s199, 2
      %s201 = scalar_select %p200, %s199, 2
      %s202 = smul.addr %s201, 8
      %s203 = scalar_lea.vmem %s0, %s202
      %s204 = smul.u32 %s17, 2
      %s205 = sadd.s32 %s204, %s18
      %p206 = scmp.lt.s32.totalorder %s205, 2
      %s207 = scalar_select %p206, %s205, 2
      %s208 = smul.u32 %s17, 2
      %s209 = sadd.s32 %s208, %s18
      %p210 = scmp.lt.s32.totalorder %s209, 2
      %s211 = scalar_select %p210, %s209, 2
      %p212 = scmp.lt.s32.totalorder %s211, 2
      %s213 = scalar_select %p212, %s211, 2
      %s214 = smul.addr %s213, 8
      %s215 = scalar_lea.vmem %s1, %s214
      %s216 = smul.u32 %s17, 2
      %s217 = sadd.s32 %s216, %s18
      %p218 = scmp.lt.s32.totalorder %s217, 2
      %s219 = scalar_select %p218, %s217, 2
      %p220 = scmp.lt.s32.totalorder %s17, 1
      %s221 = scalar_select %p220, %s17, 1
      %s222 = smul.addr %s221, 8
      %s223 = scalar_lea.vmem %s2, %s222
      %p224 = scmp.eq.s32.totalorder %s18, 0
      // Predicated region
      $region29: #{label_smoothing_loss.1} parent=27 // pred_check
        %p225 = pneg %p224
      $region30: #{label_smoothing_loss.1} parent=27 // pred_check_branch
        %227 = sbr.rel (%p225) target = $region32
      $region31: #{label_smoothing_loss.1} parent=27 // pred_region
        %vm228 = vcmask 7168
        %229 = vst.msk [vmem:[#allocation2] sm:$0xff] %vm228, 0.0
      $region32: #{label_smoothing_loss.1} parent=27 // pred_fallthru
        _
      %s230 = smul.u32 %s17, 2
      %s231 = sadd.s32 %s230, %s18
      %v232 = vld [vmem:[%s203] sm:$0xff]
      %vm233 = vcmask 261120
      %v234 = vsel %vm233, %v232, -inf
      %235 = vmax.xlane.f32.xlu0 %v234
      %v236 = vpop.xlane.xlu0 %235
      %v237 = vsub.f32 %v232, %v236
      %v238 = vmul.f32 %v237, 1.442695
      %v239 = vpow.pop %v238
      %v240 = vsel %vm233, %v239, 0.0
      %241 = vadd.xlane.f32.xlu0 %v240
      %v242 = vpop.xlane.xlu0 %241
      %v243 = vlog2.pop %v242
      %v244 = vmul.f32 %v243, 0.6931472
      %v245 = vlaneseq
      %v246 = vand.u32 %v245, 127
      %v247 = vld [vmem:[%s215] sm:$0xff]
      %248 = vset.pattern.permute.xlu0 0
      %249 = vperm.xlu0 %248, %v247
      %v250 = vpop.permute.xlu0 %249
      %vm251 = vcmp.eq.s32.totalorder %v246, %v250
      %v252 = vsel %vm251, 0.903125, 0.003125
      %v253 = vmul.f32 %v252, %v232
      %v254 = vsel %vm233, %v253, 0.0
      %255 = vadd.xlane.f32.xlu0 %v254
      %v256 = vpop.xlane.xlu0 %255
      %v257 = vadd.f32 %v244, %v236
      %v258 = vsub.f32 %v257, %v256
      %s259 = smul.u32 %s231, 8
      %v260 = vlaneseq
      %v261 = vshrl.u32 %v260, 7
      %v262 = vstv %s259
      %v263 = vadd.s32 %v262, %v261
      %p264 = scmp.lt.s32.totalorder %s231, 3
      %vm265 = vcmp.lt.s32.totalorder %v263, 18
      %s266 = scalar_select %p264, 1, 0
      %v267 = vstv %s266
      %vm268 = vcmp.eq.s32.totalorder %v267, 1
      %vm269 = vmand %vm268, %vm265
      %v270 = vld [vmem:[#allocation2] sm:$0xff]
      %v271 = vsel %vm269, %v258, 0.0
      %v272 = vadd.f32 %v270, %v271
      %vm273 = vcmask 7168
      %274 = vst.msk [vmem:[#allocation2] sm:$0xff] %vm273, %v272
      %p275 = scmp.eq.s32.totalorder %s18, 1
      // Predicated region
      $region33: #{label_smoothing_loss.1} parent=27 // pred_check
        %p276 = pneg %p275
      $region34: #{label_smoothing_loss.1} parent=27 // pred_check_branch
        %278 = sbr.rel (%p276) target = $region36
      $region35: #{label_smoothing_loss.1} parent=27 // pred_region
        %v279 = vld [vmem:[#allocation2] sm:$0xff]
        %v280 = vsel %vm273, %v279, 0.0
        %281 = vadd.xlane.f32.xlu0 %v280
        %v282 = vpop.xlane.xlu0 %281
        %v283 = vrot.slane %v282, 4
        %v284 = vadd.f32 %v282, %v283
        %v285 = vrot.slane %v284, 2
        %v286 = vadd.f32 %v284, %v285
        %v287 = vrot.slane %v286, 1
        %v288 = vadd.f32 %v286, %v287
        %s289 = vtos %v288
        %s290 = smul.f32 %s289, 0.055555556
        %v291 = vstv %s290
        %292 = vst [vmem:[%s223] sm:$0xff] %v291
      $region36: #{label_smoothing_loss.1} parent=27 // pred_fallthru
        _
      %p293 = scmp.lt.s32.totalorder %s17, 1
      %s294 = scalar_select %p293, %s17, 1
      %s295 = smul.addr %s294, 8
      %s296 = scalar_lea.vmem %s2, %s295
      // Predicated region
      $region37: #{label_smoothing_loss.1} parent=27 // pred_check
        %p297 = pneg %p111
      $region38: #{label_smoothing_loss.1} parent=27 // pred_check_branch
        %299 = sbr.rel (%p297) target = $region40
      $region39: #{label_smoothing_loss.1} parent=27 // pred_region
        _
      $region40: #{label_smoothing_loss.1} parent=27 // pred_fallthru
        _
    $region28: #{label_smoothing_loss.1} parent=5 // pred_fallthru
      _
    %p300 = scmp.le.s32.totalorder 2, %s8
    // Predicated region
    $region41: #{label_smoothing_loss.1} parent=5 // pred_check
      %p301 = pneg %p300
    $region42: #{label_smoothing_loss.1} parent=5 // pred_check_branch
      %303 = sbr.rel (%p301) target = $region44
    $region43: #{label_smoothing_loss.1} parent=5 // pred_region
      %s304 = ssub.s32 %s8, 2
      // Predicated region
      $region45: #{label_smoothing_loss.1} parent=43 // pred_check
        %p305 = pneg %p117
      $region46: #{label_smoothing_loss.1} parent=43 // pred_check_branch
        %307 = sbr.rel (%p305) target = $region48
      $region47: #{label_smoothing_loss.1} parent=43 // pred_region
        %p308 = scmp.lt.s32.totalorder %s19, 1
        %s309 = scalar_select %p308, %s19, 1
        %s310 = smul.addr %s309, 8
        %s311 = scalar_lea.vmem %s2, %s310
      $region48: #{label_smoothing_loss.1} parent=43 // pred_fallthru
        _
    $region44: #{label_smoothing_loss.1} parent=5 // pred_fallthru
      _
  $region6: #{label_smoothing_loss.1} parent=0 // loop_footer
    %s12 = sadd.s32 1, %s8
  $region7: #{label_smoothing_loss.1} parent=0 // loop_footer_branch
    %7 = sbr.rel target = $region3
  $region8: #{label_smoothing_loss.1} parent=0 // loop_exit
    _

</llo_original>
